<compile_context>
chip_gen: v6e
topology: v6e:2x2x1
jax: 0.10.0
libtpu: 0.0.40
codegen_flags: <defaults>
</compile_context>

<pallas_src>
import functools

import jax
import jax.numpy as jnp
from jax.experimental import pallas as pl
from jax.experimental.pallas import tpu as pltpu


def _round_up(x, m):
    return ((x + m - 1) // m) * m


def _relation_detect_kernel(z_ref, zlast_ref, w1t_ref, w2t_ref, b12_ref,
                            v_ref, bv_ref, o_ref):
    # z_ref:     (1, tt, H)   bf16  activation tile for batch b
    # zlast_ref: (1, 1, H)    bf16  last-token activation for batch b
    # w1t_ref:   (H, M_pad)   bf16  W1^T, zero-padded along M
    # w2t_ref:   (H, M_pad)   bf16  W2^T, zero-padded along M
    # b12_ref:   (1, M_pad)   f32   b1 + b2, zero-padded
    # v_ref:     (M_pad, O)   bf16  V^T, zero-padded along M
    # bv_ref:    (1, O)       f32
    # o_ref:     (1, tt, O)   f32
    add = (
        jnp.dot(zlast_ref[0], w2t_ref[...], preferred_element_type=jnp.float32)
        + b12_ref[...]
    )                                                             # (1, M_pad)
    s = jnp.dot(z_ref[0], w1t_ref[...], preferred_element_type=jnp.float32)
    h = jnp.tanh(s + add)                                         # (tt, M_pad) f32
    out = (
        jnp.dot(h.astype(v_ref.dtype), v_ref[...],
                preferred_element_type=jnp.float32)
        + bv_ref[...]
    )                                                             # (tt, O) f32
    o_ref[0] = out.astype(o_ref.dtype)


def prepare_params(w1, b1, w2, b2, v, bv):
    """One-time parameter prep: transpose, cast weights to bf16, pad M to a
    multiple of 128 (zero pad -> results unchanged). Do at setup time."""
    f32, bf16 = jnp.float32, jnp.bfloat16
    M, H = w1.shape
    O = v.shape[0]
    M_pad = _round_up(M, 128)

    w1_t = jnp.zeros((H, M_pad), bf16).at[:, :M].set(
        jnp.asarray(w1, f32).T.astype(bf16))
    w2_t = jnp.zeros((H, M_pad), bf16).at[:, :M].set(
        jnp.asarray(w2, f32).T.astype(bf16))
    b12 = jnp.zeros((1, M_pad), f32).at[0, :M].set(
        jnp.asarray(b1, f32) + jnp.asarray(b2, f32))
    v_t = jnp.zeros((M_pad, O), bf16).at[:M, :].set(
        jnp.asarray(v, f32).T.astype(bf16))
    bv2 = jnp.asarray(bv, f32).reshape(1, O)
    # NOTE: no plain python scalars in this dict (they would become tracers
    # under jit); all static sizes are recovered from array .shape.
    return dict(w1_t=w1_t, w2_t=w2_t, b12=b12, v_t=v_t, bv=bv2)


def _pick_tile_t(B, T, H, O, tile_t):
    """Pick the T-tile: full T when small, else a multiple of 8 capped so the
    double-buffered activation/output tiles stay well inside the default
    scoped VMEM limits."""
    if T <= tile_t:
        tt = T
    else:
        budget = 8 * 1024 * 1024                     # conservative (v5e default 16 MiB)
        per_row = 2 * (2 * H) + 2 * (4 * O)          # 2x-buffered bf16 in + f32 out
        tt = min(tile_t, max(8, budget // max(per_row, 1)))
        tt = max(8, (tt // 8) * 8)
    # v7x has 2 TensorCores: make sure the parallel grid has >= 2 steps when
    # the batch dimension alone cannot provide them.
    if B == 1 and tt == T and T > 8:
        half = max(8, _round_up(-(-T // 2), 8))
        if half < T:
            tt = half
    return tt


@functools.partial(jax.jit, static_argnames=("tile_t",))
def relation_detect_woemb(z, params, *, tile_t=256):
    """z: (B, T, H) float -> u: (B, T, O) float32."""
    B, T, H = z.shape
    M_pad = params["w1_t"].shape[1]
    O = params["v_t"].shape[1]           # static (from tracer shape)

    # Stream activations in bf16 (in a real pipeline z is already bf16 and this
    # cast is a no-op).
    z_bf = z.astype(jnp.bfloat16)
    z_last = z_bf[:, T - 1:T, :]                                   # (B, 1, H)

    tt = _pick_tile_t(B, T, H, O, tile_t)
    grid_t = pl.cdiv(T, tt)
    grid = (B, grid_t)

    flops = (2 * B * T * H * M_pad          # first matmul
             + 2 * B * T * M_pad * O        # second matmul
             + 2 * B * grid_t * H * M_pad)  # per-step token-row matmul
    bytes_accessed = (2 * B * T * H + 2 * B * H            # z, z_last (bf16)
                      + 2 * 2 * H * M_pad + 4 * M_pad      # W1^T, W2^T, b12
                      + 2 * M_pad * O + 4 * O              # V^T, bv
                      + 4 * B * T * O)                     # output (f32)

    out = pl.pallas_call(
        _relation_detect_kernel,
        out_shape=jax.ShapeDtypeStruct((B, T, O), jnp.float32),
        grid_spec=pltpu.PrefetchScalarGridSpec(
            num_scalar_prefetch=0,
            grid=grid,
            in_specs=[
                pl.BlockSpec((1, tt, H), lambda b, t: (b, t, 0)),     # z tile
                pl.BlockSpec((1, 1, H), lambda b, t: (b, 0, 0)),      # z_last
                pl.BlockSpec((H, M_pad), lambda b, t: (0, 0)),        # W1^T
                pl.BlockSpec((H, M_pad), lambda b, t: (0, 0)),        # W2^T
                pl.BlockSpec((1, M_pad), lambda b, t: (0, 0)),        # b1+b2
                pl.BlockSpec((M_pad, O), lambda b, t: (0, 0)),        # V^T
                pl.BlockSpec((1, O), lambda b, t: (0, 0)),            # bv
            ],
            out_specs=pl.BlockSpec((1, tt, O), lambda b, t: (b, t, 0)),
        ),
        compiler_params=pltpu.CompilerParams(
            dimension_semantics=("parallel", "parallel"),
        ),
        cost_estimate=pl.CostEstimate(
            flops=flops,
            transcendentals=B * T * M_pad,
            bytes_accessed=bytes_accessed,
        ),
    )(z_bf, z_last, params["w1_t"], params["w2_t"], params["b12"],
      params["v_t"], params["bv"])

    return out


def _reference(z, w1, b1, w2, b2, v, bv):
    """Pure-JAX f32 reference mirroring the PyTorch forward."""
    seq_mapping = jnp.einsum("bth,mh->btm", z, w1) + b1
    token = jnp.broadcast_to(z[:, -1, :][:, None, :], z.shape)
    token_mapping = jnp.einsum("bth,mh->btm", token, w2) + b2
    return jnp.einsum("btm,om->bto", jnp.tanh(seq_mapping + token_mapping), v) + bv


if __name__ == "__main__":
    # Small shapes consistent with the module: B x T x hidden in, B x T x out.
    B, T, H = 2, 8, 32      # batch, seq, hidden_size
    M, O = 32, 16           # map_size, out_size

    key = jax.random.PRNGKey(0)
    kz, k1, kb1, k2, kb2, kv, kbv = jax.random.split(key, 7)

    z = jax.random.normal(kz, (B, T, H), dtype=jnp.float32)
    w1 = jax.random.normal(k1, (M, H), dtype=jnp.float32) * 0.1
    b1 = jax.random.normal(kb1, (M,), dtype=jnp.float32) * 0.1
    w2 = jax.random.normal(k2, (M, H), dtype=jnp.float32) * 0.1
    b2 = jax.random.normal(kb2, (M,), dtype=jnp.float32) * 0.1
    v = jax.random.normal(kv, (O, M), dtype=jnp.float32) * 0.1
    bv = jax.random.normal(kbv, (O,), dtype=jnp.float32) * 0.1

    params = prepare_params(w1, b1, w2, b2, v, bv)   # one-time setup

    out = relation_detect_woemb(z, params)
    out = jax.block_until_ready(out)

    ref = _reference(z, w1, b1, w2, b2, v, bv)
    assert out.shape == (B, T, O)
    assert out.dtype == jnp.float32
    max_err = float(jnp.max(jnp.abs(out - ref)))
    # bf16 streaming of z / weights -> relaxed tolerance vs the f32 reference.
    assert jnp.allclose(out, ref, atol=3e-2, rtol=3e-2), (
        f"mismatch vs reference (max abs err {max_err})")

    print("KERNEL_OK")
</pallas_src>

<mosaic_0001>
module attributes {stable_mosaic.version = 11 : i64} {
  func.func @_relation_detect_kernel(%arg0: i32, %arg1: i32, %arg2: memref<1x8x32xbf16, #tpu.memory_space<vmem>>, %arg3: memref<1x1x32xbf16, #tpu.memory_space<vmem>>, %arg4: memref<32x128xbf16, #tpu.memory_space<vmem>>, %arg5: memref<32x128xbf16, #tpu.memory_space<vmem>>, %arg6: memref<1x128xf32, #tpu.memory_space<vmem>>, %arg7: memref<128x16xbf16, #tpu.memory_space<vmem>>, %arg8: memref<1x16xf32, #tpu.memory_space<vmem>>, %arg9: memref<1x8x16xf32, #tpu.memory_space<vmem>>) attributes {dimension_semantics = [#tpu.dimension_semantics<parallel>, #tpu.dimension_semantics<parallel>], iteration_bounds = array<i64: 2, 1>, scalar_prefetch = 0 : i64, scratch_operands = 0 : i64, tpu.core_type = #tpu.core_type<tc>, window_params = [{transform_indices = @transform_0, window_bounds = array<i64: 1, 8, 32>}, {transform_indices = @transform_1, window_bounds = array<i64: 1, 1, 32>}, {pipeline_mode = #tpu.pipeline_mode<synchronous>, transform_indices = @transform_2, window_bounds = array<i64: 32, 128>}, {pipeline_mode = #tpu.pipeline_mode<synchronous>, transform_indices = @transform_3, window_bounds = array<i64: 32, 128>}, {pipeline_mode = #tpu.pipeline_mode<synchronous>, transform_indices = @transform_4, window_bounds = array<i64: 1, 128>}, {pipeline_mode = #tpu.pipeline_mode<synchronous>, transform_indices = @transform_5, window_bounds = array<i64: 128, 16>}, {pipeline_mode = #tpu.pipeline_mode<synchronous>, transform_indices = @transform_6, window_bounds = array<i64: 1, 16>}, {transform_indices = @transform_7, window_bounds = array<i64: 1, 8, 16>}]} {
    %c0 = arith.constant 0 : index
    %c0_0 = arith.constant 0 : index
    %c0_1 = arith.constant 0 : index
    %0 = vector.load %arg3[%c0, %c0_0, %c0_1] : memref<1x1x32xbf16, #tpu.memory_space<vmem>>, vector<1x1x32xbf16>
    %1 = vector.shape_cast %0 : vector<1x1x32xbf16> to vector<1x32xbf16>
    %c0_2 = arith.constant 0 : index
    %c0_3 = arith.constant 0 : index
    %2 = vector.load %arg5[%c0_2, %c0_3] : memref<32x128xbf16, #tpu.memory_space<vmem>>, vector<32x128xbf16>
    %cst = arith.constant dense<0.000000e+00> : vector<1x128xf32>
    %3 = tpu.matmul %1, %2, %cst {dimension_numbers = #tpu.dot_dimension_numbers<[1], [0], [0], [1], [0, 0, 1, 1], [], []>} : vector<1x32xbf16>, vector<32x128xbf16>, vector<1x128xf32> -> vector<1x128xf32>
    %c0_4 = arith.constant 0 : index
    %c0_5 = arith.constant 0 : index
    %4 = vector.load %arg6[%c0_4, %c0_5] : memref<1x128xf32, #tpu.memory_space<vmem>>, vector<1x128xf32>
    %5 = arith.addf %3, %4 : vector<1x128xf32>
    %c0_6 = arith.constant 0 : index
    %c0_7 = arith.constant 0 : index
    %c0_8 = arith.constant 0 : index
    %6 = vector.load %arg2[%c0_6, %c0_7, %c0_8] : memref<1x8x32xbf16, #tpu.memory_space<vmem>>, vector<1x8x32xbf16>
    %7 = vector.shape_cast %6 : vector<1x8x32xbf16> to vector<8x32xbf16>
    %c0_9 = arith.constant 0 : index
    %c0_10 = arith.constant 0 : index
    %8 = vector.load %arg4[%c0_9, %c0_10] : memref<32x128xbf16, #tpu.memory_space<vmem>>, vector<32x128xbf16>
    %cst_11 = arith.constant dense<0.000000e+00> : vector<8x128xf32>
    %9 = tpu.matmul %7, %8, %cst_11 {dimension_numbers = #tpu.dot_dimension_numbers<[1], [0], [0], [1], [0, 0, 1, 1], [], []>} : vector<8x32xbf16>, vector<32x128xbf16>, vector<8x128xf32> -> vector<8x128xf32>
    %10 = vector.broadcast %5 : vector<1x128xf32> to vector<8x128xf32>
    %11 = arith.addf %9, %10 : vector<8x128xf32>
    %12 = math.tanh %11 : vector<8x128xf32>
    %13 = arith.truncf %12 : vector<8x128xf32> to vector<8x128xbf16>
    %c0_12 = arith.constant 0 : index
    %c0_13 = arith.constant 0 : index
    %14 = vector.load %arg7[%c0_12, %c0_13] : memref<128x16xbf16, #tpu.memory_space<vmem>>, vector<128x16xbf16>
    %cst_14 = arith.constant dense<0.000000e+00> : vector<8x16xf32>
    %15 = tpu.matmul %13, %14, %cst_14 {dimension_numbers = #tpu.dot_dimension_numbers<[1], [0], [0], [1], [0, 0, 1, 1], [], []>} : vector<8x128xbf16>, vector<128x16xbf16>, vector<8x16xf32> -> vector<8x16xf32>
    %c0_15 = arith.constant 0 : index
    %c0_16 = arith.constant 0 : index
    %16 = vector.load %arg8[%c0_15, %c0_16] : memref<1x16xf32, #tpu.memory_space<vmem>>, vector<1x16xf32>
    %17 = vector.broadcast %16 : vector<1x16xf32> to vector<8x16xf32>
    %18 = arith.addf %15, %17 : vector<8x16xf32>
    %c0_17 = arith.constant 0 : index
    %c0_18 = arith.constant 0 : index
    %c0_19 = arith.constant 0 : index
    %19 = vector.load %arg9[%c0_17, %c0_18, %c0_19] : memref<1x8x16xf32, #tpu.memory_space<vmem>>, vector<1x8x16xf32>
    %20 = vector.shape_cast %19 : vector<1x8x16xf32> to vector<8x16xf32>
    %21 = vector.shape_cast %18 : vector<8x16xf32> to vector<1x8x16xf32>
    tpu.vector_store %arg9[%c0_17, %c0_18, %c0_19], %21 {strides = array<i32>} : memref<1x8x16xf32, #tpu.memory_space<vmem>>, vector<1x8x16xf32>,
    return
  }
  func.func @transform_0(%arg0: i32, %arg1: i32) -> (i32, i32, i32) {
    %c0_i32 = arith.constant 0 : i32
    %c0_i32_0 = arith.constant 0 : i32
    return %arg0, %arg1, %c0_i32 : i32, i32, i32
  }
  func.func @transform_1(%arg0: i32, %arg1: i32) -> (i32, i32, i32) {
    %c0_i32 = arith.constant 0 : i32
    %c0_i32_0 = arith.constant 0 : i32
    %c0_i32_1 = arith.constant 0 : i32
    return %arg0, %c0_i32, %c0_i32_0 : i32, i32, i32
  }
  func.func @transform_2(%arg0: i32, %arg1: i32) -> (i32, i32) {
    %c0_i32 = arith.constant 0 : i32
    %c0_i32_0 = arith.constant 0 : i32
    %c0_i32_1 = arith.constant 0 : i32
    return %c0_i32, %c0_i32_0 : i32, i32
  }
  func.func @transform_3(%arg0: i32, %arg1: i32) -> (i32, i32) {
    %c0_i32 = arith.constant 0 : i32
    %c0_i32_0 = arith.constant 0 : i32
    %c0_i32_1 = arith.constant 0 : i32
    return %c0_i32, %c0_i32_0 : i32, i32
  }
  func.func @transform_4(%arg0: i32, %arg1: i32) -> (i32, i32) {
    %c0_i32 = arith.constant 0 : i32
    %c0_i32_0 = arith.constant 0 : i32
    %c0_i32_1 = arith.constant 0 : i32
    return %c0_i32, %c0_i32_0 : i32, i32
  }
  func.func @transform_5(%arg0: i32, %arg1: i32) -> (i32, i32) {
    %c0_i32 = arith.constant 0 : i32
    %c0_i32_0 = arith.constant 0 : i32
    %c0_i32_1 = arith.constant 0 : i32
    return %c0_i32, %c0_i32_0 : i32, i32
  }
  func.func @transform_6(%arg0: i32, %arg1: i32) -> (i32, i32) {
    %c0_i32 = arith.constant 0 : i32
    %c0_i32_0 = arith.constant 0 : i32
    %c0_i32_1 = arith.constant 0 : i32
    return %c0_i32, %c0_i32_0 : i32, i32
  }
  func.func @transform_7(%arg0: i32, %arg1: i32) -> (i32, i32, i32) {
    %c0_i32 = arith.constant 0 : i32
    %c0_i32_0 = arith.constant 0 : i32
    return %arg0, %arg1, %c0_i32 : i32, i32, i32
  }
}

</mosaic_0001>

<llo_original>
// kernel: relation_detect_woemb.1
$region0: #{relation_detect_woemb.1}
  #allocation0 [shape = 'u32[]', space=smem, size = 0x4, offset = 0x4, fixed_abs, tag = 'smem constant byte address 0x4 - core index']
  #allocation1 [shape = 'u32[144,128]{1,0:T(1,128)}', space=vmem, size = 0x12000, scoped, tag = 'internal scratch']
  %s0 = inlined_call_operand.vmem [shape: bf16[2,8,32], index: 0, kind: input, shape index: {}]
  %s1 = inlined_call_operand.vmem [shape: bf16[2,1,32], index: 1, kind: input, shape index: {}]
  %s2 = inlined_call_operand.vmem [shape: bf16[32,128], index: 2, kind: input, shape index: {}]
  %s3 = inlined_call_operand.vmem [shape: bf16[32,128], index: 3, kind: input, shape index: {}]
  %s4 = inlined_call_operand.vmem [shape: f32[1,128], index: 4, kind: input, shape index: {}]
  %s5 = inlined_call_operand.vmem [shape: bf16[128,16], index: 5, kind: input, shape index: {}]
  %s6 = inlined_call_operand.vmem [shape: f32[1,16], index: 6, kind: input, shape index: {}]
  %s7 = inlined_call_operand.hbm [shape: f32[2,8,16], index: 7, kind: output, shape index: {}]
  %s8 = sld [smem:[#allocation0]]
  $region61: #{relation_detect_woemb.1} parent=0
    _
  %s10 = ssub.s32 1, %s8
  %s11 = scalar_select 0, %s10, %s8
  $region1: #{relation_detect_woemb.1} parent=0
    #allocation2 [shape = 'u8[8192]{0}', space=vmem, size = 0x2000, scoped, tag = 'output window, operand 0']
    #allocation3 [shape = 's32[2]{0}', space=sflag, size = 0x8, scoped, tag = 'scoped memory for relation_detect_woemb.1']
    %12 = vsyncpa [#allocation3], 0
    %s13 = scalar_lea.sflag [#allocation3], 1
    %14 = vsyncpa %s13, 0
    loop: start=0, step=1, limit=4
    $region2: #{relation_detect_woemb.1} parent=1 // loop_pre_header
      _
    $region3: #{relation_detect_woemb.1} parent=1 // loop_header
      %s16 = sphi 0, %s20
      %p17 = scmp.ge.s32.totalorder %s16, 4
      %s23 = sphi 0, %s35
      %s24 = sphi 0, %s31
      %s25 = sphi 0, %s23
      %s26 = sphi 0, %s24
      %s27 = sphi 0, %s25
      %s28 = sphi 0, %s26
      %s40 = sphi 0, %s42
      %s43 = sphi 0, %s40
      %s44 = sphi 0, %s43
      %s60 = sphi 0, %s44
      %s66 = sphi 0, %s68
      %s69 = sphi 0, %s66
      %s70 = sphi 0, %s69
      %s86 = sphi 0, %s70
      %s90 = sphi 0, %s90
      %s92 = sphi 0, %s90
      %s93 = sphi 0, %s92
      %s107 = sphi 0, %s93
      %s111 = sphi 0, %s111
      %s113 = sphi 0, %s111
      %s114 = sphi 0, %s113
      %s128 = sphi 0, %s114
      %s132 = sphi 0, %s132
      %s134 = sphi 0, %s132
      %s135 = sphi 0, %s134
      %s149 = sphi 0, %s135
      %s153 = sphi 0, %s153
      %s155 = sphi 0, %s153
      %s156 = sphi 0, %s155
      %s170 = sphi 0, %s156
      %s174 = sphi 0, %s174
      %s176 = sphi 0, %s174
      %s177 = sphi 0, %s176
      %s191 = sphi 0, %s177
      %s199 = sphi 0, %s201
      %s202 = sphi 0, %s199
      %s203 = sphi 0, %s202
      %s219 = sphi 0, %s203
    $region4: #{relation_detect_woemb.1} parent=1 // loop_header_branch
      %19 = sbr.rel (%p17) target = $region8
    $region5: #{relation_detect_woemb.1} parent=1 // loop_body
      %s21 = ssub.s32 %s16, 1
      %s22 = ssub.s32 %s16, 2
      %s29 = sadd.s32 1, %s24
      %p30 = scmp.ge.s32.totalorder %s29, 1
      %s31 = scalar_select %p30, 0, %s29
      %s32 = sadd.s32 1, %s23
      %s33 = scalar_select %p30, %s32, %s23
      %p34 = scmp.ge.s32.totalorder %s33, 2
      %s35 = scalar_select %p34, 0, %s33
      %s36 = ssub.s32 %s23, %s35
      %s37 = ssub.s32 %s24, %s31
      %s38 = sor.u32 %s36, %s37
      %p39 = scmp.eq.s32.totalorder %s38, 0
      %s41 = sadd.s32 %s40, 1
      %s42 = scalar_select %p39, %s40, %s41
      %p45 = pneg %p39
      %p46 = scmp.eq.s32.totalorder %s16, 1
      %p47 = por %p45, %p46
      %p48 = scmp.ne.s32.totalorder %s40, %s43
      %p49 = scmp.eq.s32.totalorder %s16, 0
      %p50 = por %p48, %p49
      %p51 = scmp.ne.s32.totalorder %s40, %s43
      %p52 = scmp.eq.s32.totalorder %s21, 1
      %p53 = por %p51, %p52
      %p54 = scmp.ne.s32.totalorder %s43, %s44
      %p55 = scmp.eq.s32.totalorder %s21, 0
      %p56 = por %p54, %p55
      %p57 = scmp.ne.s32.totalorder %s43, %s44
      %p58 = scmp.eq.s32.totalorder %s22, 1
      %p59 = por %p57, %p58
      %p61 = scmp.ne.s32.totalorder %s44, %s60
      %p62 = scmp.eq.s32.totalorder %s22, 0
      %p63 = por %p61, %p62
      %s64 = ssub.s32 %s23, %s35
      %p65 = scmp.eq.s32.totalorder %s64, 0
      %s67 = sadd.s32 %s66, 1
      %s68 = scalar_select %p65, %s66, %s67
      %p71 = pneg %p65
      %p72 = scmp.eq.s32.totalorder %s16, 1
      %p73 = por %p71, %p72
      %p74 = scmp.ne.s32.totalorder %s66, %s69
      %p75 = scmp.eq.s32.totalorder %s16, 0
      %p76 = por %p74, %p75
      %p77 = scmp.ne.s32.totalorder %s66, %s69
      %p78 = scmp.eq.s32.totalorder %s21, 1
      %p79 = por %p77, %p78
      %p80 = scmp.ne.s32.totalorder %s69, %s70
      %p81 = scmp.eq.s32.totalorder %s21, 0
      %p82 = por %p80, %p81
      %p83 = scmp.ne.s32.totalorder %s69, %s70
      %p84 = scmp.eq.s32.totalorder %s22, 1
      %p85 = por %p83, %p84
      %p87 = scmp.ne.s32.totalorder %s70, %s86
      %p88 = scmp.eq.s32.totalorder %s22, 0
      %p89 = por %p87, %p88
      %s91 = sadd.s32 %s90, 1
      %p94 = scmp.eq.s32.totalorder %s16, 1
      %p95 = scmp.ne.s32.totalorder %s90, %s92
      %p96 = scmp.eq.s32.totalorder %s16, 0
      %p97 = por %p95, %p96
      %p98 = scmp.ne.s32.totalorder %s90, %s92
      %p99 = scmp.eq.s32.totalorder %s21, 1
      %p100 = por %p98, %p99
      %p101 = scmp.ne.s32.totalorder %s92, %s93
      %p102 = scmp.eq.s32.totalorder %s21, 0
      %p103 = por %p101, %p102
      %p104 = scmp.ne.s32.totalorder %s92, %s93
      %p105 = scmp.eq.s32.totalorder %s22, 1
      %p106 = por %p104, %p105
      %p108 = scmp.ne.s32.totalorder %s93, %s107
      %p109 = scmp.eq.s32.totalorder %s22, 0
      %p110 = por %p108, %p109
      %s112 = sadd.s32 %s111, 1
      %p115 = scmp.eq.s32.totalorder %s16, 1
      %p116 = scmp.ne.s32.totalorder %s111, %s113
      %p117 = scmp.eq.s32.totalorder %s16, 0
      %p118 = por %p116, %p117
      %p119 = scmp.ne.s32.totalorder %s111, %s113
      %p120 = scmp.eq.s32.totalorder %s21, 1
      %p121 = por %p119, %p120
      %p122 = scmp.ne.s32.totalorder %s113, %s114
      %p123 = scmp.eq.s32.totalorder %s21, 0
      %p124 = por %p122, %p123
      %p125 = scmp.ne.s32.totalorder %s113, %s114
      %p126 = scmp.eq.s32.totalorder %s22, 1
      %p127 = por %p125, %p126
      %p129 = scmp.ne.s32.totalorder %s114, %s128
      %p130 = scmp.eq.s32.totalorder %s22, 0
      %p131 = por %p129, %p130
      %s133 = sadd.s32 %s132, 1
      %p136 = scmp.eq.s32.totalorder %s16, 1
      %p137 = scmp.ne.s32.totalorder %s132, %s134
      %p138 = scmp.eq.s32.totalorder %s16, 0
      %p139 = por %p137, %p138
      %p140 = scmp.ne.s32.totalorder %s132, %s134
      %p141 = scmp.eq.s32.totalorder %s21, 1
      %p142 = por %p140, %p141
      %p143 = scmp.ne.s32.totalorder %s134, %s135
      %p144 = scmp.eq.s32.totalorder %s21, 0
      %p145 = por %p143, %p144
      %p146 = scmp.ne.s32.totalorder %s134, %s135
      %p147 = scmp.eq.s32.totalorder %s22, 1
      %p148 = por %p146, %p147
      %p150 = scmp.ne.s32.totalorder %s135, %s149
      %p151 = scmp.eq.s32.totalorder %s22, 0
      %p152 = por %p150, %p151
      %s154 = sadd.s32 %s153, 1
      %p157 = scmp.eq.s32.totalorder %s16, 1
      %p158 = scmp.ne.s32.totalorder %s153, %s155
      %p159 = scmp.eq.s32.totalorder %s16, 0
      %p160 = por %p158, %p159
      %p161 = scmp.ne.s32.totalorder %s153, %s155
      %p162 = scmp.eq.s32.totalorder %s21, 1
      %p163 = por %p161, %p162
      %p164 = scmp.ne.s32.totalorder %s155, %s156
      %p165 = scmp.eq.s32.totalorder %s21, 0
      %p166 = por %p164, %p165
      %p167 = scmp.ne.s32.totalorder %s155, %s156
      %p168 = scmp.eq.s32.totalorder %s22, 1
      %p169 = por %p167, %p168
      %p171 = scmp.ne.s32.totalorder %s156, %s170
      %p172 = scmp.eq.s32.totalorder %s22, 0
      %p173 = por %p171, %p172
      %s175 = sadd.s32 %s174, 1
      %p178 = scmp.eq.s32.totalorder %s16, 1
      %p179 = scmp.ne.s32.totalorder %s174, %s176
      %p180 = scmp.eq.s32.totalorder %s16, 0
      %p181 = por %p179, %p180
      %p182 = scmp.ne.s32.totalorder %s174, %s176
      %p183 = scmp.eq.s32.totalorder %s21, 1
      %p184 = por %p182, %p183
      %p185 = scmp.ne.s32.totalorder %s176, %s177
      %p186 = scmp.eq.s32.totalorder %s21, 0
      %p187 = por %p185, %p186
      %p188 = scmp.ne.s32.totalorder %s176, %s177
      %p189 = scmp.eq.s32.totalorder %s22, 1
      %p190 = por %p188, %p189
      %p192 = scmp.ne.s32.totalorder %s177, %s191
      %p193 = scmp.eq.s32.totalorder %s22, 0
      %p194 = por %p192, %p193
      %s195 = ssub.s32 %s23, %s35
      %s196 = ssub.s32 %s24, %s31
      %s197 = sor.u32 %s195, %s196
      %p198 = scmp.eq.s32.totalorder %s197, 0
      %s200 = sadd.s32 %s199, 1
      %s201 = scalar_select %p198, %s199, %s200
      %p204 = pneg %p198
      %p205 = scmp.eq.s32.totalorder %s16, 1
      %p206 = por %p204, %p205
      %p207 = scmp.ne.s32.totalorder %s199, %s202
      %p208 = scmp.eq.s32.totalorder %s16, 0
      %p209 = por %p207, %p208
      %p210 = scmp.ne.s32.totalorder %s199, %s202
      %p211 = scmp.eq.s32.totalorder %s21, 1
      %p212 = por %p210, %p211
      %p213 = scmp.ne.s32.totalorder %s202, %s203
      %p214 = scmp.eq.s32.totalorder %s21, 0
      %p215 = por %p213, %p214
      %p216 = scmp.ne.s32.totalorder %s202, %s203
      %p217 = scmp.eq.s32.totalorder %s22, 1
      %p218 = por %p216, %p217
      %p220 = scmp.ne.s32.totalorder %s203, %s219
      %p221 = scmp.eq.s32.totalorder %s22, 0
      %p222 = por %p220, %p221
      %p223 = scmp.le.s32.totalorder 1, %s16
      %p224 = scmp.lt.s32.totalorder %s16, 3
      %p225 = pnand %p223, %p224
      %p226 = pneg %p225
      // Predicated region
      $region9: #{relation_detect_woemb.1} parent=5 // pred_check
        _
      $region10: #{relation_detect_woemb.1} parent=5 // pred_check_branch
        %228 = sbr.rel (%p225) target = $region12
      $region11: #{relation_detect_woemb.1} parent=5 // pred_region
        %s229 = ssub.s32 %s16, 1
        // Predicated region
        $region13: #{relation_detect_woemb.1} parent=11 // pred_check
          %p230 = pneg %p103
        $region14: #{relation_detect_woemb.1} parent=11 // pred_check_branch
          %232 = sbr.rel (%p230) target = $region16
        $region15: #{relation_detect_woemb.1} parent=11 // pred_region
          _
        $region16: #{relation_detect_woemb.1} parent=11 // pred_fallthru
          _
        // Predicated region
        $region17: #{relation_detect_woemb.1} parent=11 // pred_check
          %p233 = pneg %p124
        $region18: #{relation_detect_woemb.1} parent=11 // pred_check_branch
          %235 = sbr.rel (%p233) target = $region20
        $region19: #{relation_detect_woemb.1} parent=11 // pred_region
          _
        $region20: #{relation_detect_woemb.1} parent=11 // pred_fallthru
          _
        // Predicated region
        $region21: #{relation_detect_woemb.1} parent=11 // pred_check
          %p236 = pneg %p145
        $region22: #{relation_detect_woemb.1} parent=11 // pred_check_branch
          %238 = sbr.rel (%p236) target = $region24
        $region23: #{relation_detect_woemb.1} parent=11 // pred_region
          _
        $region24: #{relation_detect_woemb.1} parent=11 // pred_fallthru
          _
        // Predicated region
        $region25: #{relation_detect_woemb.1} parent=11 // pred_check
          %p239 = pneg %p166
        $region26: #{relation_detect_woemb.1} parent=11 // pred_check_branch
          %241 = sbr.rel (%p239) target = $region28
        $region27: #{relation_detect_woemb.1} parent=11 // pred_region
          _
        $region28: #{relation_detect_woemb.1} parent=11 // pred_fallthru
          _
        // Predicated region
        $region29: #{relation_detect_woemb.1} parent=11 // pred_check
          %p242 = pneg %p187
        $region30: #{relation_detect_woemb.1} parent=11 // pred_check_branch
          %244 = sbr.rel (%p242) target = $region32
        $region31: #{relation_detect_woemb.1} parent=11 // pred_region
          _
        $region32: #{relation_detect_woemb.1} parent=11 // pred_fallthru
          _
      $region12: #{relation_detect_woemb.1} parent=5 // pred_fallthru
        _
      %p245 = scmp.lt.s32.totalorder %s16, 2
      // Predicated region
      $region33: #{relation_detect_woemb.1} parent=5 // pred_check
        %p246 = pneg %p245
      $region34: #{relation_detect_woemb.1} parent=5 // pred_check_branch
        %248 = sbr.rel (%p246) target = $region36
      $region35: #{relation_detect_woemb.1} parent=5 // pred_region
        // Predicated region
        $region37: #{relation_detect_woemb.1} parent=35 // pred_check
          %p249 = pneg %p50
        $region38: #{relation_detect_woemb.1} parent=35 // pred_check_branch
          %251 = sbr.rel (%p249) target = $region40
        $region39: #{relation_detect_woemb.1} parent=35 // pred_region
          %p252 = scmp.lt.s32.totalorder %s23, 1
          %s253 = scalar_select %p252, %s23, 1
          %p254 = scmp.lt.s32.totalorder %s24, 0
          %s255 = scalar_select %p254, %s24, 0
          %s256 = sadd.s32 %s255, %s253
          %s257 = smul.addr %s256, 4
          %s258 = scalar_lea.vmem %s0, %s257
        $region40: #{relation_detect_woemb.1} parent=35 // pred_fallthru
          _
        // Predicated region
        $region41: #{relation_detect_woemb.1} parent=35 // pred_check
          %p259 = pneg %p76
        $region42: #{relation_detect_woemb.1} parent=35 // pred_check_branch
          %261 = sbr.rel (%p259) target = $region44
        $region43: #{relation_detect_woemb.1} parent=35 // pred_region
          %p262 = scmp.lt.s32.totalorder %s23, 1
          %s263 = scalar_select %p262, %s23, 1
          %s264 = scalar_lea.vmem %s1, %s263
        $region44: #{relation_detect_woemb.1} parent=35 // pred_fallthru
          _
      $region36: #{relation_detect_woemb.1} parent=5 // pred_fallthru
        _
      %p265 = scmp.le.s32.totalorder 1, %s16
      %p266 = scmp.lt.s32.totalorder %s16, 3
      %p267 = pnand %p265, %p266
      %p268 = pneg %p267
      // Predicated region
      $region45: #{relation_detect_woemb.1} parent=5 // pred_check
        _
      $region46: #{relation_detect_woemb.1} parent=5 // pred_check_branch
        %270 = sbr.rel (%p267) target = $region48
      $region47: #{relation_detect_woemb.1} parent=5 // pred_region
        %s271 = ssub.s32 %s16, 1
        %p272 = scmp.lt.s32.totalorder %s25, 1
        %s273 = scalar_select %p272, %s25, 1
        %p274 = scmp.lt.s32.totalorder %s26, 0
        %s275 = scalar_select %p274, %s26, 0
        %s276 = sadd.s32 %s275, %s273
        %s277 = smul.addr %s276, 4
        %s278 = scalar_lea.vmem %s0, %s277
        %p279 = pneg %p56
        %p280 = pneg %p53
        %p281 = scmp.lt.s32.totalorder %s25, 1
        %s282 = scalar_select %p281, %s25, 1
        %s283 = scalar_lea.vmem %s1, %s282
        %p284 = pneg %p82
        %p285 = pneg %p79
        %p286 = pneg %p103
        %p287 = pneg %p100
        %p288 = pneg %p124
        %p289 = pneg %p121
        %p290 = pneg %p145
        %p291 = pneg %p142
        %p292 = pneg %p166
        %p293 = pneg %p163
        %p294 = pneg %p187
        %p295 = pneg %p184
        %p296 = pneg %p215
        %p297 = pneg %p212
        %s298 = sand.u32 %s202, 1
        %s299 = scalar_lea.sflag [#allocation3], %s298
        %s300 = sand.u32 %s202, 1
        %s301 = smul.addr %s300, 8
        %s302 = scalar_lea.vmem [#allocation2], %s301
        %p303 = scmp.lt.s32.totalorder %s25, 1
        %s304 = scalar_select %p303, %s25, 1
        %p305 = scmp.lt.s32.totalorder %s26, 0
        %s306 = scalar_select %p305, %s26, 0
        %s307 = sadd.s32 %s306, %s304
        %s308 = smul.addr %s307, 4
        %s309 = scalar_lea.vmem %s0, %s308
        %p310 = scmp.lt.s32.totalorder %s25, 1
        %s311 = scalar_select %p310, %s25, 1
        %s312 = scalar_lea.vmem %s1, %s311
        %v314 = vld [vmem:[%s312] sm:$0x1]
        %v315 = vld [vmem:[%s3] sm:$0xf]
        %v316 = vld [vmem:[%s3 + $0x4] sm:$0xf]
        %v317 = vld [vmem:[%s3 + $0x8] sm:$0xf]
        %v318 = vld [vmem:[%s3 + $0xc] sm:$0xf]
        %v319 = vld [vmem:[%s4] sm:$0x1]
        %v324 = vunpack.c.l.b16 %v315
        %v325 = vunpack.c.l.b16 %v316
        %v326 = vunpack.c.l.b16 %v317
        %v327 = vunpack.c.l.b16 %v318
        %v328 = vpack.c.b16 %v325, %v324
        %v329 = vpack.c.b16 %v327, %v326
        %vm332 = vcmask 261120
        %v334 = vsel %vm332, %v314, 0
        %336 = vmatprep.subr.bf16.mxu0 0
        %337 = vmatpush1.bf16.msra.mxu0 0
        %338 = vmatprep.subr.bf16.mxu0 0
        %339 = vmatpush1.bf16.msra.mxu0 0
        %340 = vmatprep.subr.bf16.mxu0 0
        %341 = vmatpush1.bf16.msra.mxu0 0
        %342 = vmatprep.subr.bf16.mxu0 0
        %343 = vmatpush1.bf16.msra.mxu0 0
        %344 = vmatprep.subr.bf16.mxu0 0
        %345 = vmatpush1.bf16.msra.mxu0 0
        %346 = vmatprep.subr.bf16.mxu0 0
        %347 = vmatpush1.bf16.msra.mxu0 0
        %348 = vmatprep.subr.bf16.mxu0 0
        %349 = vmatpush1.bf16.msra.mxu0 %v329
        %350 = vmatprep.subr.bf16.mxu0 0
        %351 = vmatpush1.bf16.msra.mxu0 %v328
        %352 = vmatprep.subr.bf16.mxu0 0
        %353 = vmatpush2.bf16.msra.mxu0 0
        %354 = vmatprep.subr.bf16.mxu0 0
        %355 = vmatpush2.bf16.msra.mxu0 0
        %356 = vmatprep.subr.bf16.mxu0 0
        %357 = vmatpush2.bf16.msra.mxu0 0
        %358 = vmatprep.subr.bf16.mxu0 0
        %359 = vmatpush2.bf16.msra.mxu0 0
        %360 = vmatprep.subr.bf16.mxu0 0
        %361 = vmatpush2.bf16.msra.mxu0 0
        %362 = vmatprep.subr.bf16.mxu0 0
        %363 = vmatpush2.bf16.msra.mxu0 0
        %364 = vmatprep.subr.bf16.mxu0 0
        %365 = vmatpush2.bf16.msra.mxu0 0
        %366 = vmatprep.subr.bf16.mxu0 0
        %367 = vmatpush2.bf16.msra.mxu0 0
        %368 = vmatprep.mubr.bf16.mxu0 0
        %369 = vmatmul.mubr.bf16.gmra.mxu0 %v334
        %v370 = vpop.f32.mrf.mxu0
        %v371 = vadd.f32 %v319, %v370
        %v372 = vpop.f32.mrf.mxu0
        %v373 = vpop.f32.mrf.mxu0
        %v374 = vpop.f32.mrf.mxu0
        %375 = vdwg.mxu0
        %v376 = vld [vmem:[%s309] sm:$0xf]
        %v377 = vld [vmem:[%s2] sm:$0xf]
        %v378 = vld [vmem:[%s2 + $0x4] sm:$0xf]
        %v379 = vld [vmem:[%s2 + $0x8] sm:$0xf]
        %v380 = vld [vmem:[%s2 + $0xc] sm:$0xf]
        %v381 = vlaneseq
        %v382 = vshrl.u32 %v381, 7
        %v383 = vsub.s32 0, %v382
        %v384 = vrot.slane %v371, %v383
        %v389 = vunpack.c.l.b16 %v377
        %v390 = vunpack.c.l.b16 %v378
        %v391 = vunpack.c.l.b16 %v379
        %v392 = vunpack.c.l.b16 %v380
        %v393 = vpack.c.b16 %v390, %v389
        %v394 = vpack.c.b16 %v392, %v391
        %v398 = vsel %vm332, %v376, 0
        %400 = vmatprep.subr.bf16.mxu0 0
        %401 = vmatpush1.bf16.msra.mxu0 0
        %402 = vmatprep.subr.bf16.mxu0 0
        %403 = vmatpush1.bf16.msra.mxu0 0
        %404 = vmatprep.subr.bf16.mxu0 0
        %405 = vmatpush1.bf16.msra.mxu0 0
        %406 = vmatprep.subr.bf16.mxu0 0
        %407 = vmatpush1.bf16.msra.mxu0 0
        %408 = vmatprep.subr.bf16.mxu0 0
        %409 = vmatpush1.bf16.msra.mxu0 0
        %410 = vmatprep.subr.bf16.mxu0 0
        %411 = vmatpush1.bf16.msra.mxu0 0
        %412 = vmatprep.subr.bf16.mxu0 0
        %413 = vmatpush1.bf16.msra.mxu0 %v394
        %414 = vmatprep.subr.bf16.mxu0 0
        %415 = vmatpush1.bf16.msra.mxu0 %v393
        %416 = vmatprep.subr.bf16.mxu0 0
        %417 = vmatpush2.bf16.msra.mxu0 0
        %418 = vmatprep.subr.bf16.mxu0 0
        %419 = vmatpush2.bf16.msra.mxu0 0
        %420 = vmatprep.subr.bf16.mxu0 0
        %421 = vmatpush2.bf16.msra.mxu0 0
        %422 = vmatprep.subr.bf16.mxu0 0
        %423 = vmatpush2.bf16.msra.mxu0 0
        %424 = vmatprep.subr.bf16.mxu0 0
        %425 = vmatpush2.bf16.msra.mxu0 0
        %426 = vmatprep.subr.bf16.mxu0 0
        %427 = vmatpush2.bf16.msra.mxu0 0
        %428 = vmatprep.subr.bf16.mxu0 0
        %429 = vmatpush2.bf16.msra.mxu0 0
        %430 = vmatprep.subr.bf16.mxu0 0
        %431 = vmatpush2.bf16.msra.mxu0 0
        %432 = vmatprep.mubr.bf16.mxu0 0
        %433 = vmatmul.mubr.bf16.gmra.mxu0 %v398
        %v434 = vpop.f32.mrf.mxu0
        %v435 = vadd.f32 %v384, %v434
        %v436 = vpop.f32.mrf.mxu0
        %v437 = vpop.f32.mrf.mxu0
        %v438 = vpop.f32.mrf.mxu0
        %439 = vdwg.mxu0
        %v440 = vtanh.pop %v435
        %v441 = vpack.c.bf16 %v440, %v440
        %v442 = vld [vmem:[%s5] sm:$0xf]
        %v443 = vld [vmem:[%s5 + $0x4] sm:$0xf]
        %v444 = vld [vmem:[%s5 + $0x8] sm:$0xf]
        %v445 = vld [vmem:[%s5 + $0xc] sm:$0xf]
        %v446 = vld [vmem:[%s5 + $0x10] sm:$0xf]
        %v447 = vld [vmem:[%s5 + $0x14] sm:$0xf]
        %v448 = vld [vmem:[%s5 + $0x18] sm:$0xf]
        %v449 = vld [vmem:[%s5 + $0x1c] sm:$0xf]
        %v450 = vld [vmem:[%s5 + $0x20] sm:$0xf]
        %v451 = vld [vmem:[%s5 + $0x24] sm:$0xf]
        %v452 = vld [vmem:[%s5 + $0x28] sm:$0xf]
        %v453 = vld [vmem:[%s5 + $0x2c] sm:$0xf]
        %v454 = vld [vmem:[%s5 + $0x30] sm:$0xf]
        %v455 = vld [vmem:[%s5 + $0x34] sm:$0xf]
        %v456 = vld [vmem:[%s5 + $0x38] sm:$0xf]
        %v457 = vld [vmem:[%s5 + $0x3c] sm:$0xf]
        %v458 = vld [vmem:[%s6] sm:$0x1]
        %v460 = vlaneseq
        %v461 = vshrl.u32 %v460, 7
        %v462 = vsub.s32 0, %v461
        %v463 = vrot.slane %v458, %v462
        %v481 = vunpack.c.l.b16 %v442
        %v482 = vunpack.c.l.b16 %v443
        %v483 = vunpack.c.l.b16 %v444
        %v484 = vunpack.c.l.b16 %v445
        %v485 = vunpack.c.l.b16 %v446
        %v486 = vunpack.c.l.b16 %v447
        %v487 = vunpack.c.l.b16 %v448
        %v488 = vunpack.c.l.b16 %v449
        %v489 = vunpack.c.l.b16 %v450
        %v490 = vunpack.c.l.b16 %v451
        %v491 = vunpack.c.l.b16 %v452
        %v492 = vunpack.c.l.b16 %v453
        %v493 = vunpack.c.l.b16 %v454
        %v494 = vunpack.c.l.b16 %v455
        %v495 = vunpack.c.l.b16 %v456
        %v496 = vunpack.c.l.b16 %v457
        %v497 = vpack.c.b16 %v482, %v481
        %v498 = vpack.c.b16 %v484, %v483
        %v499 = vpack.c.b16 %v486, %v485
        %v500 = vpack.c.b16 %v488, %v487
        %v501 = vpack.c.b16 %v490, %v489
        %v502 = vpack.c.b16 %v492, %v491
        %v503 = vpack.c.b16 %v494, %v493
        %v504 = vpack.c.b16 %v496, %v495
        %513 = vmatprep.subr.bf16.mxu0 0
        %514 = vmatpush1.bf16.msra.mxu0 %v504
        %515 = vmatprep.subr.bf16.mxu0 0
        %516 = vmatpush1.bf16.msra.mxu0 %v503
        %517 = vmatprep.subr.bf16.mxu0 0
        %518 = vmatpush1.bf16.msra.mxu0 %v502
        %519 = vmatprep.subr.bf16.mxu0 0
        %520 = vmatpush1.bf16.msra.mxu0 %v501
        %521 = vmatprep.subr.bf16.mxu0 0
        %522 = vmatpush1.bf16.msra.mxu0 %v500
        %523 = vmatprep.subr.bf16.mxu0 0
        %524 = vmatpush1.bf16.msra.mxu0 %v499
        %525 = vmatprep.subr.bf16.mxu0 0
        %526 = vmatpush1.bf16.msra.mxu0 %v498
        %527 = vmatprep.subr.bf16.mxu0 0
        %528 = vmatpush1.bf16.msra.mxu0 %v497
        %529 = vmatprep.subr.bf16.mxu0 0
        %530 = vmatpush2.bf16.msra.mxu0 0
        %531 = vmatprep.subr.bf16.mxu0 0
        %532 = vmatpush2.bf16.msra.mxu0 0
        %533 = vmatprep.subr.bf16.mxu0 0
        %534 = vmatpush2.bf16.msra.mxu0 0
        %535 = vmatprep.subr.bf16.mxu0 0
        %536 = vmatpush2.bf16.msra.mxu0 0
        %537 = vmatprep.subr.bf16.mxu0 0
        %538 = vmatpush2.bf16.msra.mxu0 0
        %539 = vmatprep.subr.bf16.mxu0 0
        %540 = vmatpush2.bf16.msra.mxu0 0
        %541 = vmatprep.subr.bf16.mxu0 0
        %542 = vmatpush2.bf16.msra.mxu0 0
        %543 = vmatprep.subr.bf16.mxu0 0
        %544 = vmatpush2.bf16.msra.mxu0 0
        %545 = vmatprep.mubr.bf16.mxu0 0
        %546 = vmatmul.mubr.bf16.gmra.mxu0 %v441
        %v547 = vpop.f32.mrf.mxu0
        %v548 = vadd.f32 %v463, %v547
        %v549 = vpop.f32.mrf.mxu0
        %v550 = vpop.f32.mrf.mxu0
        %v551 = vpop.f32.mrf.mxu0
        %552 = vdwg.mxu0
        %vm553 = vcmask 130048
        %554 = vst.msk [vmem:[%s302] sm:$0xff] %vm553, %v548
        %s555 = sand.u32 %s202, 1
        %s556 = scalar_lea.sflag [#allocation3], %s555
        %s557 = sand.u32 %s202, 1
        %s558 = smul.addr %s557, 8
        %s559 = scalar_lea.vmem [#allocation2], %s558
        // Predicated region
        $region49: #{relation_detect_woemb.1} parent=47 // pred_check
          %p560 = pneg %p212
        $region50: #{relation_detect_woemb.1} parent=47 // pred_check_branch
          %562 = sbr.rel (%p560) target = $region52
        $region51: #{relation_detect_woemb.1} parent=47 // pred_region
          %s564 = ssub.s32 128, 128
          %565 = vsyncadd %s556, %s564
          %s566 = sadd.s32 %s26, %s25
          %s567 = smul.addr %s566, 128
          %s568 = scalar_lea.hbm %s7, %s567
          %s570 = sshll.u32 %s559, 4
          %s571 = int_to_ptr.vmem [resolvable:$true] %s570
          %573 = dma.vmem_to_hbm [thread:$0]  %s571, 128, %s568, %s556
        $region52: #{relation_detect_woemb.1} parent=47 // pred_fallthru
          _
      $region48: #{relation_detect_woemb.1} parent=5 // pred_fallthru
        _
      %p574 = scmp.le.s32.totalorder 2, %s16
      // Predicated region
      $region53: #{relation_detect_woemb.1} parent=5 // pred_check
        %p575 = pneg %p574
      $region54: #{relation_detect_woemb.1} parent=5 // pred_check_branch
        %577 = sbr.rel (%p575) target = $region56
      $region55: #{relation_detect_woemb.1} parent=5 // pred_region
        %s578 = ssub.s32 %s16, 2
        // Predicated region
        $region57: #{relation_detect_woemb.1} parent=55 // pred_check
          %p579 = pneg %p218
        $region58: #{relation_detect_woemb.1} parent=55 // pred_check_branch
          %581 = sbr.rel (%p579) target = $region60
        $region59: #{relation_detect_woemb.1} parent=55 // pred_region
          %s582 = sand.u32 %s203, 1
          %s583 = scalar_lea.sflag [#allocation3], %s582
          %s584 = sand.u32 %s203, 1
          %s585 = smul.addr %s584, 8
          %s586 = scalar_lea.vmem [#allocation2], %s585
          %587 = dma.done %s583, 128
        $region60: #{relation_detect_woemb.1} parent=55 // pred_fallthru
          _
      $region56: #{relation_detect_woemb.1} parent=5 // pred_fallthru
        _
    $region6: #{relation_detect_woemb.1} parent=1 // loop_footer
      %s20 = sadd.s32 1, %s16
    $region7: #{relation_detect_woemb.1} parent=1 // loop_footer_branch
      %15 = sbr.rel target = $region3
    $region8: #{relation_detect_woemb.1} parent=1 // loop_exit
      _
    %588 = vsyncpa [#allocation3], 1
    %s589 = scalar_lea.sflag [#allocation3], 1
    %590 = vsyncpa %s589, 1

</llo_original>
